<compile_context>
chip_gen: v6e
topology: v6e:2x2x1
jax: 0.10.0
libtpu: 0.0.40
codegen_flags: <defaults>
</compile_context>

<pallas_src>
import jax
import jax.numpy as jnp
from jax import lax
from jax.experimental import pallas as pl
from jax.experimental.pallas import tpu as pltpu

EPS = 1e-5  # PyTorch BatchNorm1d default eps


# ------------------------------- helpers ---------------------------------- #
def _fold_bn(W, b, bn_params):
    """Fold eval-mode BatchNorm1d into the preceding Linear (exact)."""
    gamma, beta, mean, var = bn_params
    scale = gamma / jnp.sqrt(var + EPS)
    return W * scale[None, :], (b - mean) * scale + beta


def _round_up(v, m):
    return (v + m - 1) // m * m


def _pad_rows(W, rows):
    return jnp.pad(W, ((0, rows - W.shape[0]), (0, 0)))


def _pad_cols(X, cols):
    return jnp.pad(X, ((0, 0), (0, cols - X.shape[1])))


# ------------------------------- forward ----------------------------------- #
def coord_mpnn_forward(x, pos, edge_index, edge_attr, batch, num_graphs, p):
    n = x.shape[0]
    e = edge_attr.shape[0]
    g = num_graphs
    d = p["W_in"].shape[1]
    assert d % 8 == 0, "emb_dim must be a multiple of 8 for aligned weight packing"
    assert p["W_pred"].shape[1] == 1, "out_dim is fixed to 1 in this model"

    f32 = jnp.float32

    # ---- activations / indices -------------------------------------------- #
    xp = jnp.concatenate([x, pos], axis=1).astype(f32)
    din_p = _round_up(xp.shape[1], 8)
    xp_pad = _pad_cols(xp, din_p)

    ea = edge_attr.astype(f32)
    de_p = _round_up(ea.shape[1], 8)
    ea_pad = _pad_cols(ea, de_p)

    src_idx = edge_index[0].reshape(e, 1).astype(jnp.int32)   # j (source)
    dst_idx = edge_index[1].reshape(e, 1).astype(jnp.int32)   # i (target / aggregation)
    bat_idx = batch.reshape(n, 1).astype(jnp.int32)

    counts = jax.ops.segment_sum(jnp.ones((n,), f32), batch, num_graphs)
    counts = jnp.maximum(counts, 1.0)                         # guard empty graphs
    node_pool_w = (1.0 / counts)[batch].reshape(n, 1).astype(f32)

    # ---- fold BatchNorms (eval mode) into the Linear layers ---------------- #
    wm1, bm1 = _fold_bn(p["W_m1"], p["b_m1"], p["bn_m1"])
    wm2, bm2 = _fold_bn(p["W_m2"], p["b_m2"], p["bn_m2"])
    wu1, bu1 = _fold_bn(p["W_u1"], p["b_u1"], p["bn_u1"])
    wu2, bu2 = _fold_bn(p["W_u2"], p["b_u2"], p["bn_u2"])

    # split concat-weights into per-input blocks (cat+matmul == sum of matmuls)
    wm1_hd, wm1_hs, wm1_e = wm1[:d], wm1[d:2 * d], wm1[2 * d:]
    wu1_h, wu1_a = wu1[:d], wu1[d:]

    # ---- pack all weights into one 8-row-aligned VMEM block ---------------- #
    blocks = [
        _pad_rows(p["W_in"].astype(f32), din_p),   # 0: lin_in
        wm1_hd.astype(f32),                        # 1: msg L1, h_i block
        wm1_hs.astype(f32),                        # 2: msg L1, h_j block
        _pad_rows(wm1_e.astype(f32), de_p),        # 3: msg L1, edge block
        wm2.astype(f32),                           # 4: msg L2
        wu1_h.astype(f32),                         # 5: upd L1, h block
        wu1_a.astype(f32),                         # 6: upd L1, aggr block
        wu2.astype(f32),                           # 7: upd L2
    ]
    offs, r = [], 0
    for blk in blocks:
        offs.append((r, r + blk.shape[0]))
        r += blk.shape[0]
    W_pack = jnp.concatenate(blocks, axis=0)       # (K, d), K multiple of 8

    # ---- pack biases + prediction head into one (8, d) block --------------- #
    b_pred_row = jnp.zeros((d,), f32).at[0].set(p["b_pred"].astype(f32)[0])
    misc = jnp.stack(
        [
            p["b_in"].astype(f32),          # row 0
            bm1.astype(f32),                # row 1
            bm2.astype(f32),                # row 2
            bu1.astype(f32),                # row 3
            bu2.astype(f32),                # row 4
            p["W_pred"].astype(f32)[:, 0],  # row 5: W_pred^T
            b_pred_row,                     # row 6: b_pred at lane 0
            jnp.zeros((d,), f32),           # row 7: pad
        ],
        axis=0,
    )

    # ------------------------------- kernel --------------------------------- #
    def kernel(xp_ref, ea_ref, dst_ref, src_ref, bat_ref, poolw_ref,
               w_ref, misc_ref, out_ref):
        def w(k):
            lo, hi = offs[k]
            return w_ref[lo:hi, :]           # static, 8-aligned slice

        def bias(row):
            return misc_ref[row:row + 1, :]  # (1, d)

        # h = lin_in(cat[x, pos])
        h = jnp.dot(xp_ref[...], w(0), preferred_element_type=f32) + bias(0)

        # message linear, reassociated to node granularity, then MXU gather
        t_d = jnp.dot(h, w(1), preferred_element_type=f32)   # for h_i (dst)
        t_s = jnp.dot(h, w(2), preferred_element_type=f32)   # for h_j (src)

        edge_iota = lax.broadcasted_iota(jnp.int32, (e, n), 1)
        dst_oh = (edge_iota == dst_ref[...]).astype(f32)      # (e, n)
        src_oh = (edge_iota == src_ref[...]).astype(f32)      # (e, n)

        m = (jnp.dot(dst_oh, t_d, preferred_element_type=f32)
             + jnp.dot(src_oh, t_s, preferred_element_type=f32)
             + jnp.dot(ea_ref[...], w(3), preferred_element_type=f32)
             + bias(1))
        m = jnp.maximum(m, 0.0)
        m = jnp.maximum(jnp.dot(m, w(4), preferred_element_type=f32) + bias(2), 0.0)

        # scatter-add over target nodes: contract the edge axis of both operands
        aggr = lax.dot_general(dst_oh, m, (((0,), (0,)), ((), ())),
                               preferred_element_type=f32)    # (n, d)

        # update MLP
        u = (jnp.dot(h, w(5), preferred_element_type=f32)
             + jnp.dot(aggr, w(6), preferred_element_type=f32)
             + bias(3))
        u = jnp.maximum(u, 0.0)
        u = jnp.maximum(jnp.dot(u, w(7), preferred_element_type=f32) + bias(4), 0.0)

        # residual
        h_new = h + u

        # prediction head at node level; mean-pool weight folded per node
        w_pred_row = misc_ref[5:6, :]                                   # (1, d)
        logit = jnp.sum(h_new * w_pred_row, axis=1, keepdims=True)      # (n, 1)
        weighted = logit * poolw_ref[...]                               # (n, 1)
        graph_oh = (lax.broadcasted_iota(jnp.int32, (n, g), 1)
                    == bat_ref[...]).astype(f32)                        # (n, g)
        pooled = jnp.sum(weighted * graph_oh, axis=0, keepdims=True)    # (1, g)
        out_ref[...] = pooled + misc_ref[6:7, 0:1]

    args = (xp_pad, ea_pad, dst_idx, src_idx, bat_idx, node_pool_w, W_pack, misc)

    flops = 2 * (
        n * din_p * d          # lin_in
        + 2 * n * d * d        # t_d, t_s
        + 2 * e * n * d        # one-hot gathers
        + e * de_p * d         # edge-feature term
        + e * d * d            # msg layer 2
        + e * n * d            # scatter-add
        + 2 * n * d * d        # upd layer 1
        + n * d * d            # upd layer 2
        + n * d + n * g        # head + pool
    )
    bytes_accessed = 4 * (sum(int(a.size) for a in args) + g)
    ce = pl.CostEstimate(flops=int(flops), transcendentals=0,
                         bytes_accessed=int(bytes_accessed))

    out = pl.pallas_call(
        kernel,
        out_shape=jax.ShapeDtypeStruct((1, num_graphs), jnp.float32),
        in_specs=[pl.BlockSpec(memory_space=pltpu.MemorySpace.VMEM) for _ in args],
        out_specs=pl.BlockSpec(memory_space=pltpu.MemorySpace.VMEM),
        cost_estimate=ce,
    )(*args)
    return out.reshape(-1)


# ------------------------- pure-JAX reference ------------------------------ #
def reference_forward(x, pos, edge_index, edge_attr, batch, num_graphs, p):
    def bn(v, bn_params):
        gamma, beta, mean, var = bn_params
        return (v - mean) / jnp.sqrt(var + EPS) * gamma + beta

    n = x.shape[0]
    h = jnp.concatenate([x, pos], 1) @ p["W_in"] + p["b_in"]
    src, dst = edge_index[0], edge_index[1]
    h_i, h_j = h[dst], h[src]
    m = jnp.concatenate([h_i, h_j, edge_attr], -1) @ p["W_m1"] + p["b_m1"]
    m = jax.nn.relu(bn(m, p["bn_m1"]))
    m = jax.nn.relu(bn(m @ p["W_m2"] + p["b_m2"], p["bn_m2"]))
    aggr = jax.ops.segment_sum(m, dst, n)
    u = jnp.concatenate([h, aggr], -1) @ p["W_u1"] + p["b_u1"]
    u = jax.nn.relu(bn(u, p["bn_u1"]))
    u = jax.nn.relu(bn(u @ p["W_u2"] + p["b_u2"], p["bn_u2"]))
    h = h + u
    counts = jax.ops.segment_sum(jnp.ones((n,), jnp.float32), batch, num_graphs)
    hg = jax.ops.segment_sum(h, batch, num_graphs) / jnp.maximum(counts, 1.0)[:, None]
    return (hg @ p["W_pred"] + p["b_pred"]).reshape(-1)


# ------------------------- deterministic parameters ------------------------ #
def init_params(key, in_dim=11, coord_dim=3, emb_dim=32, edge_dim=4, out_dim=1):
    keys = iter(jax.random.split(key, 16))

    def lin(k, fan_in, fan_out):
        k1, k2 = jax.random.split(k)
        bound = 1.0 / jnp.sqrt(fan_in)
        W = jax.random.uniform(k1, (fan_in, fan_out), jnp.float32, -bound, bound)
        b = jax.random.uniform(k2, (fan_out,), jnp.float32, -bound, bound)
        return W, b

    def bn(k, dim):
        k1, k2, k3, k4 = jax.random.split(k, 4)
        gamma = jax.random.uniform(k1, (dim,), jnp.float32, 0.5, 1.5)
        beta = 0.1 * jax.random.normal(k2, (dim,), jnp.float32)
        mean = 0.1 * jax.random.normal(k3, (dim,), jnp.float32)
        var = jax.random.uniform(k4, (dim,), jnp.float32, 0.5, 1.5)
        return (gamma, beta, mean, var)

    p = {}
    p["W_in"], p["b_in"] = lin(next(keys), in_dim + coord_dim, emb_dim)
    p["W_m1"], p["b_m1"] = lin(next(keys), 2 * emb_dim + edge_dim, emb_dim)
    p["bn_m1"] = bn(next(keys), emb_dim)
    p["W_m2"], p["b_m2"] = lin(next(keys), emb_dim, emb_dim)
    p["bn_m2"] = bn(next(keys), emb_dim)
    p["W_u1"], p["b_u1"] = lin(next(keys), 2 * emb_dim, emb_dim)
    p["bn_u1"] = bn(next(keys), emb_dim)
    p["W_u2"], p["b_u2"] = lin(next(keys), emb_dim, emb_dim)
    p["bn_u2"] = bn(next(keys), emb_dim)
    p["W_pred"], p["b_pred"] = lin(next(keys), emb_dim, out_dim)
    return p


if __name__ == "__main__":
    key = jax.random.PRNGKey(0)
    kx, kp, ke, kea, kparam = jax.random.split(key, 5)

    n, e, num_graphs = 8, 16, 2
    in_dim, coord_dim, emb_dim, edge_dim, out_dim = 11, 3, 32, 4, 1

    x = jax.random.normal(kx, (n, in_dim), jnp.float32)
    pos = jax.random.normal(kp, (n, coord_dim), jnp.float32)
    edge_index = jax.random.randint(ke, (2, e), 0, n)
    edge_attr = jax.random.normal(kea, (e, edge_dim), jnp.float32)
    batch = jnp.array([0, 0, 0, 0, 1, 1, 1, 1], jnp.int32)

    params = init_params(kparam, in_dim, coord_dim, emb_dim, edge_dim, out_dim)

    out = coord_mpnn_forward(x, pos, edge_index, edge_attr, batch, num_graphs, params)
    out = jax.block_until_ready(out)

    ref = reference_forward(x, pos, edge_index, edge_attr, batch, num_graphs, params)
    assert out.shape == (num_graphs,)
    assert jnp.allclose(out, ref, atol=1e-4, rtol=1e-4), (out, ref)
    print("KERNEL_OK")
</pallas_src>

<mosaic_0001>
module attributes {stable_mosaic.version = 11 : i64} {
  func.func @kernel(%arg0: memref<8x16xf32, #tpu.memory_space<vmem>>, %arg1: memref<16x8xf32, #tpu.memory_space<vmem>>, %arg2: memref<16x1xi32, #tpu.memory_space<vmem>>, %arg3: memref<16x1xi32, #tpu.memory_space<vmem>>, %arg4: memref<8x1xi32, #tpu.memory_space<vmem>>, %arg5: memref<8x1xf32, #tpu.memory_space<vmem>>, %arg6: memref<216x32xf32, #tpu.memory_space<vmem>>, %arg7: memref<8x32xf32, #tpu.memory_space<vmem>>, %arg8: memref<1x2xf32, #tpu.memory_space<vmem>>) attributes {dimension_semantics = [], scalar_prefetch = 0 : i64, scratch_operands = 0 : i64, tpu.core_type = #tpu.core_type<tc>} {
    %c0 = arith.constant 0 : index
    %c0_0 = arith.constant 0 : index
    %0 = vector.load %arg0[%c0, %c0_0] : memref<8x16xf32, #tpu.memory_space<vmem>>, vector<8x16xf32>
    %c0_1 = arith.constant 0 : index
    %c0_2 = arith.constant 0 : index
    %1 = vector.load %arg6[%c0_1, %c0_2] : memref<216x32xf32, #tpu.memory_space<vmem>>, vector<16x32xf32>
    %cst = arith.constant dense<0.000000e+00> : vector<8x32xf32>
    %2 = tpu.matmul %0, %1, %cst {dimension_numbers = #tpu.dot_dimension_numbers<[1], [0], [0], [1], [0, 0, 1, 1], [], []>} : vector<8x16xf32>, vector<16x32xf32>, vector<8x32xf32> -> vector<8x32xf32>
    %c0_3 = arith.constant 0 : index
    %c0_4 = arith.constant 0 : index
    %3 = vector.load %arg7[%c0_3, %c0_4] : memref<8x32xf32, #tpu.memory_space<vmem>>, vector<1x32xf32>
    %4 = vector.broadcast %3 : vector<1x32xf32> to vector<8x32xf32>
    %5 = arith.addf %2, %4 : vector<8x32xf32>
    %c16 = arith.constant 16 : index
    %c0_5 = arith.constant 0 : index
    %6 = vector.load %arg6[%c16, %c0_5] : memref<216x32xf32, #tpu.memory_space<vmem>>, vector<32x32xf32>
    %cst_6 = arith.constant dense<0.000000e+00> : vector<8x32xf32>
    %7 = tpu.matmul %5, %6, %cst_6 {dimension_numbers = #tpu.dot_dimension_numbers<[1], [0], [0], [1], [0, 0, 1, 1], [], []>} : vector<8x32xf32>, vector<32x32xf32>, vector<8x32xf32> -> vector<8x32xf32>
    %c48 = arith.constant 48 : index
    %c0_7 = arith.constant 0 : index
    %8 = vector.load %arg6[%c48, %c0_7] : memref<216x32xf32, #tpu.memory_space<vmem>>, vector<32x32xf32>
    %cst_8 = arith.constant dense<0.000000e+00> : vector<8x32xf32>
    %9 = tpu.matmul %5, %8, %cst_8 {dimension_numbers = #tpu.dot_dimension_numbers<[1], [0], [0], [1], [0, 0, 1, 1], [], []>} : vector<8x32xf32>, vector<32x32xf32>, vector<8x32xf32> -> vector<8x32xf32>
    %10 = tpu.iota {dimensions = array<i32: 1>} : vector<16x8xi32>
    %c0_9 = arith.constant 0 : index
    %c0_10 = arith.constant 0 : index
    %11 = vector.load %arg2[%c0_9, %c0_10] : memref<16x1xi32, #tpu.memory_space<vmem>>, vector<16x1xi32>
    %12 = vector.broadcast %11 : vector<16x1xi32> to vector<16x8xi32>
    %13 = arith.cmpi eq, %10, %12 : vector<16x8xi32>
    %14 = arith.extui %13 : vector<16x8xi1> to vector<16x8xi32>
    %15 = arith.sitofp %14 : vector<16x8xi32> to vector<16x8xf32>
    %c0_11 = arith.constant 0 : index
    %c0_12 = arith.constant 0 : index
    %16 = vector.load %arg3[%c0_11, %c0_12] : memref<16x1xi32, #tpu.memory_space<vmem>>, vector<16x1xi32>
    %17 = vector.broadcast %16 : vector<16x1xi32> to vector<16x8xi32>
    %18 = arith.cmpi eq, %10, %17 : vector<16x8xi32>
    %19 = arith.extui %18 : vector<16x8xi1> to vector<16x8xi32>
    %20 = arith.sitofp %19 : vector<16x8xi32> to vector<16x8xf32>
    %cst_13 = arith.constant dense<0.000000e+00> : vector<16x32xf32>
    %21 = tpu.matmul %15, %7, %cst_13 {dimension_numbers = #tpu.dot_dimension_numbers<[1], [0], [0], [1], [0, 0, 1, 1], [], []>} : vector<16x8xf32>, vector<8x32xf32>, vector<16x32xf32> -> vector<16x32xf32>
    %cst_14 = arith.constant dense<0.000000e+00> : vector<16x32xf32>
    %22 = tpu.matmul %20, %9, %cst_14 {dimension_numbers = #tpu.dot_dimension_numbers<[1], [0], [0], [1], [0, 0, 1, 1], [], []>} : vector<16x8xf32>, vector<8x32xf32>, vector<16x32xf32> -> vector<16x32xf32>
    %23 = arith.addf %21, %22 : vector<16x32xf32>
    %c0_15 = arith.constant 0 : index
    %c0_16 = arith.constant 0 : index
    %24 = vector.load %arg1[%c0_15, %c0_16] : memref<16x8xf32, #tpu.memory_space<vmem>>, vector<16x8xf32>
    %c80 = arith.constant 80 : index
    %c0_17 = arith.constant 0 : index
    %25 = vector.load %arg6[%c80, %c0_17] : memref<216x32xf32, #tpu.memory_space<vmem>>, vector<8x32xf32>
    %cst_18 = arith.constant dense<0.000000e+00> : vector<16x32xf32>
    %26 = tpu.matmul %24, %25, %cst_18 {dimension_numbers = #tpu.dot_dimension_numbers<[1], [0], [0], [1], [0, 0, 1, 1], [], []>} : vector<16x8xf32>, vector<8x32xf32>, vector<16x32xf32> -> vector<16x32xf32>
    %27 = arith.addf %23, %26 : vector<16x32xf32>
    %c1 = arith.constant 1 : index
    %c0_19 = arith.constant 0 : index
    %28 = vector.load %arg7[%c1, %c0_19] : memref<8x32xf32, #tpu.memory_space<vmem>>, vector<1x32xf32>
    %29 = vector.broadcast %28 : vector<1x32xf32> to vector<16x32xf32>
    %30 = arith.addf %27, %29 : vector<16x32xf32>
    %cst_20 = arith.constant 0.000000e+00 : f32
    %31 = vector.broadcast %cst_20 : f32 to vector<16x32xf32>
    %32 = arith.maximumf %30, %31 : vector<16x32xf32>
    %c88 = arith.constant 88 : index
    %c0_21 = arith.constant 0 : index
    %33 = vector.load %arg6[%c88, %c0_21] : memref<216x32xf32, #tpu.memory_space<vmem>>, vector<32x32xf32>
    %cst_22 = arith.constant dense<0.000000e+00> : vector<16x32xf32>
    %34 = tpu.matmul %32, %33, %cst_22 {dimension_numbers = #tpu.dot_dimension_numbers<[1], [0], [0], [1], [0, 0, 1, 1], [], []>} : vector<16x32xf32>, vector<32x32xf32>, vector<16x32xf32> -> vector<16x32xf32>
    %c2 = arith.constant 2 : index
    %c0_23 = arith.constant 0 : index
    %35 = vector.load %arg7[%c2, %c0_23] : memref<8x32xf32, #tpu.memory_space<vmem>>, vector<1x32xf32>
    %36 = vector.broadcast %35 : vector<1x32xf32> to vector<16x32xf32>
    %37 = arith.addf %34, %36 : vector<16x32xf32>
    %cst_24 = arith.constant 0.000000e+00 : f32
    %38 = vector.broadcast %cst_24 : f32 to vector<16x32xf32>
    %39 = arith.maximumf %37, %38 : vector<16x32xf32>
    %cst_25 = arith.constant dense<0.000000e+00> : vector<8x32xf32>
    %40 = tpu.matmul %15, %39, %cst_25 {dimension_numbers = #tpu.dot_dimension_numbers<[0], [0], [1], [1], [0, 1, 1, 1], [], []>} : vector<16x8xf32>, vector<16x32xf32>, vector<8x32xf32> -> vector<8x32xf32>
    %c120 = arith.constant 120 : index
    %c0_26 = arith.constant 0 : index
    %41 = vector.load %arg6[%c120, %c0_26] : memref<216x32xf32, #tpu.memory_space<vmem>>, vector<32x32xf32>
    %cst_27 = arith.constant dense<0.000000e+00> : vector<8x32xf32>
    %42 = tpu.matmul %5, %41, %cst_27 {dimension_numbers = #tpu.dot_dimension_numbers<[1], [0], [0], [1], [0, 0, 1, 1], [], []>} : vector<8x32xf32>, vector<32x32xf32>, vector<8x32xf32> -> vector<8x32xf32>
    %c152 = arith.constant 152 : index
    %c0_28 = arith.constant 0 : index
    %43 = vector.load %arg6[%c152, %c0_28] : memref<216x32xf32, #tpu.memory_space<vmem>>, vector<32x32xf32>
    %cst_29 = arith.constant dense<0.000000e+00> : vector<8x32xf32>
    %44 = tpu.matmul %40, %43, %cst_29 {dimension_numbers = #tpu.dot_dimension_numbers<[1], [0], [0], [1], [0, 0, 1, 1], [], []>} : vector<8x32xf32>, vector<32x32xf32>, vector<8x32xf32> -> vector<8x32xf32>
    %45 = arith.addf %42, %44 : vector<8x32xf32>
    %c3 = arith.constant 3 : index
    %c0_30 = arith.constant 0 : index
    %46 = vector.load %arg7[%c3, %c0_30] : memref<8x32xf32, #tpu.memory_space<vmem>>, vector<1x32xf32>
    %47 = vector.broadcast %46 : vector<1x32xf32> to vector<8x32xf32>
    %48 = arith.addf %45, %47 : vector<8x32xf32>
    %cst_31 = arith.constant 0.000000e+00 : f32
    %49 = vector.broadcast %cst_31 : f32 to vector<8x32xf32>
    %50 = arith.maximumf %48, %49 : vector<8x32xf32>
    %c184 = arith.constant 184 : index
    %c0_32 = arith.constant 0 : index
    %51 = vector.load %arg6[%c184, %c0_32] : memref<216x32xf32, #tpu.memory_space<vmem>>, vector<32x32xf32>
    %cst_33 = arith.constant dense<0.000000e+00> : vector<8x32xf32>
    %52 = tpu.matmul %50, %51, %cst_33 {dimension_numbers = #tpu.dot_dimension_numbers<[1], [0], [0], [1], [0, 0, 1, 1], [], []>} : vector<8x32xf32>, vector<32x32xf32>, vector<8x32xf32> -> vector<8x32xf32>
    %c4 = arith.constant 4 : index
    %c0_34 = arith.constant 0 : index
    %53 = vector.load %arg7[%c4, %c0_34] : memref<8x32xf32, #tpu.memory_space<vmem>>, vector<1x32xf32>
    %54 = vector.broadcast %53 : vector<1x32xf32> to vector<8x32xf32>
    %55 = arith.addf %52, %54 : vector<8x32xf32>
    %cst_35 = arith.constant 0.000000e+00 : f32
    %56 = vector.broadcast %cst_35 : f32 to vector<8x32xf32>
    %57 = arith.maximumf %55, %56 : vector<8x32xf32>
    %58 = arith.addf %5, %57 : vector<8x32xf32>
    %c5 = arith.constant 5 : index
    %c0_36 = arith.constant 0 : index
    %59 = vector.load %arg7[%c5, %c0_36] : memref<8x32xf32, #tpu.memory_space<vmem>>, vector<1x32xf32>
    %60 = vector.broadcast %59 : vector<1x32xf32> to vector<8x32xf32>
    %61 = arith.mulf %58, %60 : vector<8x32xf32>
    %cst_37 = arith.constant dense<0.000000e+00> : vector<8xf32>
    %62 = vector.multi_reduction <add>, %61, %cst_37 [1] : vector<8x32xf32> to vector<8xf32>
    %63 = vector.shape_cast %62 : vector<8xf32> to vector<8x1xf32>
    %c0_38 = arith.constant 0 : index
    %c0_39 = arith.constant 0 : index
    %64 = vector.load %arg5[%c0_38, %c0_39] : memref<8x1xf32, #tpu.memory_space<vmem>>, vector<8x1xf32>
    %65 = arith.mulf %63, %64 : vector<8x1xf32>
    %66 = tpu.iota {dimensions = array<i32: 1>} : vector<8x2xi32>
    %c0_40 = arith.constant 0 : index
    %c0_41 = arith.constant 0 : index
    %67 = vector.load %arg4[%c0_40, %c0_41] : memref<8x1xi32, #tpu.memory_space<vmem>>, vector<8x1xi32>
    %68 = vector.broadcast %67 : vector<8x1xi32> to vector<8x2xi32>
    %69 = arith.cmpi eq, %66, %68 : vector<8x2xi32>
    %70 = arith.extui %69 : vector<8x2xi1> to vector<8x2xi32>
    %71 = arith.sitofp %70 : vector<8x2xi32> to vector<8x2xf32>
    %72 = vector.broadcast %65 : vector<8x1xf32> to vector<8x2xf32>
    %73 = arith.mulf %72, %71 : vector<8x2xf32>
    %cst_42 = arith.constant dense<0.000000e+00> : vector<2xf32>
    %74 = vector.multi_reduction <add>, %73, %cst_42 [0] : vector<8x2xf32> to vector<2xf32>
    %75 = vector.shape_cast %74 : vector<2xf32> to vector<1x2xf32>
    %c6 = arith.constant 6 : index
    %c0_43 = arith.constant 0 : index
    %76 = vector.load %arg7[%c6, %c0_43] : memref<8x32xf32, #tpu.memory_space<vmem>>, vector<1x1xf32>
    %77 = vector.broadcast %76 : vector<1x1xf32> to vector<1x2xf32>
    %78 = arith.addf %75, %77 : vector<1x2xf32>
    %c0_44 = arith.constant 0 : index
    %c0_45 = arith.constant 0 : index
    %79 = vector.load %arg8[%c0_44, %c0_45] : memref<1x2xf32, #tpu.memory_space<vmem>>, vector<1x2xf32>
    tpu.vector_store %arg8[%c0_44, %c0_45], %78 {strides = array<i32>} : memref<1x2xf32, #tpu.memory_space<vmem>>, vector<1x2xf32>,
    return
  }
}

</mosaic_0001>

<llo_original>
// kernel: tpu_custom_call.1
$region0: #{tpu_custom_call.1}
  #allocation0 [shape = 'u32[]', space=smem, size = 0x4, offset = 0x4, fixed_abs, tag = 'smem constant byte address 0x4 - core index']
  #allocation1 [shape = 'u32[144,128]{1,0:T(1,128)}', space=vmem, size = 0x12000, scoped, tag = 'internal scratch']
  %s0 = inlined_call_operand.vmem [shape: f32[8,16], index: 0, kind: input, shape index: {}]
  %s1 = inlined_call_operand.vmem [shape: f32[16,8], index: 1, kind: input, shape index: {}]
  %s2 = inlined_call_operand.vmem [shape: s32[16,1], index: 2, kind: input, shape index: {}]
  %s3 = inlined_call_operand.vmem [shape: s32[16,1], index: 3, kind: input, shape index: {}]
  %s4 = inlined_call_operand.vmem [shape: s32[8,1], index: 4, kind: input, shape index: {}]
  %s5 = inlined_call_operand.vmem [shape: f32[8,1], index: 5, kind: input, shape index: {}]
  %s6 = inlined_call_operand.vmem [shape: f32[216,32], index: 6, kind: input, shape index: {}]
  %s7 = inlined_call_operand.vmem [shape: f32[8,32], index: 7, kind: input, shape index: {}]
  %s8 = inlined_call_operand.hbm [shape: f32[1,2], index: 8, kind: output, shape index: {}]
  %s9 = sld [smem:[#allocation0]]
  $region42: #{tpu_custom_call.1} parent=0
    _
  %s11 = ssub.s32 1, %s9
  %s12 = scalar_select 0, %s11, %s9
  $region1: #{tpu_custom_call.1} parent=0
    #allocation2 [shape = 'u8[512]{0}', space=vmem, size = 0x400, scoped, tag = 'output window, operand 0, single buffered']
    #allocation3 [shape = 's32[1]{0}', space=sflag, size = 0x4, scoped, tag = 'scoped memory for tpu_custom_call.1']
    %13 = vsyncpa [#allocation3], 0
    // Predicated region
    $region2: #{tpu_custom_call.1} parent=1 // pred_check
      _
    $region3: #{tpu_custom_call.1} parent=1 // pred_check_branch
      %15 = sbr.rel (0) target = $region5
    $region4: #{tpu_custom_call.1} parent=1 // pred_region
      _
    $region5: #{tpu_custom_call.1} parent=1 // pred_fallthru
      _
    // Predicated region
    $region6: #{tpu_custom_call.1} parent=1 // pred_check
      _
    $region7: #{tpu_custom_call.1} parent=1 // pred_check_branch
      %17 = sbr.rel (0) target = $region9
    $region8: #{tpu_custom_call.1} parent=1 // pred_region
      _
    $region9: #{tpu_custom_call.1} parent=1 // pred_fallthru
      _
    // Predicated region
    $region10: #{tpu_custom_call.1} parent=1 // pred_check
      _
    $region11: #{tpu_custom_call.1} parent=1 // pred_check_branch
      %19 = sbr.rel (0) target = $region13
    $region12: #{tpu_custom_call.1} parent=1 // pred_region
      _
    $region13: #{tpu_custom_call.1} parent=1 // pred_fallthru
      _
    // Predicated region
    $region14: #{tpu_custom_call.1} parent=1 // pred_check
      _
    $region15: #{tpu_custom_call.1} parent=1 // pred_check_branch
      %21 = sbr.rel (0) target = $region17
    $region16: #{tpu_custom_call.1} parent=1 // pred_region
      _
    $region17: #{tpu_custom_call.1} parent=1 // pred_fallthru
      _
    // Predicated region
    $region18: #{tpu_custom_call.1} parent=1 // pred_check
      _
    $region19: #{tpu_custom_call.1} parent=1 // pred_check_branch
      %23 = sbr.rel (0) target = $region21
    $region20: #{tpu_custom_call.1} parent=1 // pred_region
      _
    $region21: #{tpu_custom_call.1} parent=1 // pred_fallthru
      _
    // Predicated region
    $region22: #{tpu_custom_call.1} parent=1 // pred_check
      _
    $region23: #{tpu_custom_call.1} parent=1 // pred_check_branch
      %25 = sbr.rel (0) target = $region25
    $region24: #{tpu_custom_call.1} parent=1 // pred_region
      _
    $region25: #{tpu_custom_call.1} parent=1 // pred_fallthru
      _
    // Predicated region
    $region26: #{tpu_custom_call.1} parent=1 // pred_check
      _
    $region27: #{tpu_custom_call.1} parent=1 // pred_check_branch
      %27 = sbr.rel (0) target = $region29
    $region28: #{tpu_custom_call.1} parent=1 // pred_region
      _
    $region29: #{tpu_custom_call.1} parent=1 // pred_fallthru
      _
    // Predicated region
    $region30: #{tpu_custom_call.1} parent=1 // pred_check
      _
    $region31: #{tpu_custom_call.1} parent=1 // pred_check_branch
      %29 = sbr.rel (0) target = $region33
    $region32: #{tpu_custom_call.1} parent=1 // pred_region
      _
    $region33: #{tpu_custom_call.1} parent=1 // pred_fallthru
      _
    %v30 = vld [vmem:[%s0] sm:$0xff]
    %v31 = vld [vmem:[%s6] sm:$0xff]
    %v32 = vld [vmem:[%s6 + $0x8] sm:$0xff]
    %v33 = vld [vmem:[%s7] sm:$0x1]
    %v34 = vlaneseq
    %v35 = vshrl.u32 %v34, 7
    %v36 = vsub.s32 0, %v35
    %v37 = vrot.slane %v33, %v36
    %vm38 = vcmask 130048
    %v40 = vsel %vm38, %v30, 0
    %42 = vmatprep.subr.mxu0 0.0
    %43 = vmatpush1.msra.mxu0 0.0
    %44 = vmatprep.subr.mxu0 0.0
    %45 = vmatpush1.msra.mxu0 0.0
    %46 = vmatprep.subr.mxu0 0.0
    %47 = vmatpush1.msra.mxu0 0.0
    %48 = vmatprep.subr.mxu0 0.0
    %49 = vmatpush1.msra.mxu0 0.0
    %50 = vmatprep.subr.mxu0 0.0
    %51 = vmatpush1.msra.mxu0 0.0
    %52 = vmatprep.subr.mxu0 0.0
    %53 = vmatpush1.msra.mxu0 0.0
    %54 = vmatprep.subr.mxu0 0.0
    %55 = vmatpush1.msra.mxu0 0.0
    %56 = vmatprep.subr.mxu0 0.0
    %57 = vmatpush1.msra.mxu0 0.0
    %58 = vmatprep.subr.mxu0 0.0
    %59 = vmatpush1.msra.mxu0 0.0
    %60 = vmatprep.subr.mxu0 0.0
    %61 = vmatpush1.msra.mxu0 0.0
    %62 = vmatprep.subr.mxu0 0.0
    %63 = vmatpush1.msra.mxu0 0.0
    %64 = vmatprep.subr.mxu0 0.0
    %65 = vmatpush1.msra.mxu0 0.0
    %66 = vmatprep.subr.mxu0 0.0
    %67 = vmatpush1.msra.mxu0 0.0
    %68 = vmatprep.subr.mxu0 0.0
    %69 = vmatpush1.msra.mxu0 0.0
    %70 = vmatprep.subr.mxu0 0.0
    %71 = vmatpush1.msra.mxu0 %v32
    %72 = vmatprep.subr.mxu0 0.0
    %73 = vmatpush1.msra.mxu0 %v31
    %74 = vmatprep.subr.mxu0 0.0
    %75 = vmatpush2.msra.mxu0 0.0
    %76 = vmatprep.subr.mxu0 0.0
    %77 = vmatpush2.msra.mxu0 0.0
    %78 = vmatprep.subr.mxu0 0.0
    %79 = vmatpush2.msra.mxu0 0.0
    %80 = vmatprep.subr.mxu0 0.0
    %81 = vmatpush2.msra.mxu0 0.0
    %82 = vmatprep.subr.mxu0 0.0
    %83 = vmatpush2.msra.mxu0 0.0
    %84 = vmatprep.subr.mxu0 0.0
    %85 = vmatpush2.msra.mxu0 0.0
    %86 = vmatprep.subr.mxu0 0.0
    %87 = vmatpush2.msra.mxu0 0.0
    %88 = vmatprep.subr.mxu0 0.0
    %89 = vmatpush2.msra.mxu0 0.0
    %90 = vmatprep.subr.mxu0 0.0
    %91 = vmatpush2.msra.mxu0 0.0
    %92 = vmatprep.subr.mxu0 0.0
    %93 = vmatpush2.msra.mxu0 0.0
    %94 = vmatprep.subr.mxu0 0.0
    %95 = vmatpush2.msra.mxu0 0.0
    %96 = vmatprep.subr.mxu0 0.0
    %97 = vmatpush2.msra.mxu0 0.0
    %98 = vmatprep.subr.mxu0 0.0
    %99 = vmatpush2.msra.mxu0 0.0
    %100 = vmatprep.subr.mxu0 0.0
    %101 = vmatpush2.msra.mxu0 0.0
    %102 = vmatprep.subr.mxu0 0.0
    %103 = vmatpush2.msra.mxu0 0.0
    %104 = vmatprep.subr.mxu0 0.0
    %105 = vmatpush2.msra.mxu0 0.0
    %106 = vmatprep.mubr.f32.mxu0 0.0
    %107 = vmatmul.mubr.f32.gmra.mxu0 %v40
    %v108 = vpop.f32.mrf.mxu0
    %v109 = vadd.f32 %v37, %v108
    %v110 = vpop.f32.mrf.mxu0
    %111 = vdwg.mxu0
    %v112 = vld [vmem:[%s6 + $0x10] sm:$0xff]
    %v113 = vld [vmem:[%s6 + $0x18] sm:$0xff]
    %v114 = vld [vmem:[%s6 + $0x20] sm:$0xff]
    %v115 = vld [vmem:[%s6 + $0x28] sm:$0xff]
    %vm116 = vcmask 261120
    %v118 = vsel %vm116, %v109, 0
    %120 = vmatprep.subr.mxu0 0.0
    %121 = vmatpush1.msra.mxu0 0.0
    %122 = vmatprep.subr.mxu0 0.0
    %123 = vmatpush1.msra.mxu0 0.0
    %124 = vmatprep.subr.mxu0 0.0
    %125 = vmatpush1.msra.mxu0 0.0
    %126 = vmatprep.subr.mxu0 0.0
    %127 = vmatpush1.msra.mxu0 0.0
    %128 = vmatprep.subr.mxu0 0.0
    %129 = vmatpush1.msra.mxu0 0.0
    %130 = vmatprep.subr.mxu0 0.0
    %131 = vmatpush1.msra.mxu0 0.0
    %132 = vmatprep.subr.mxu0 0.0
    %133 = vmatpush1.msra.mxu0 0.0
    %134 = vmatprep.subr.mxu0 0.0
    %135 = vmatpush1.msra.mxu0 0.0
    %136 = vmatprep.subr.mxu0 0.0
    %137 = vmatpush1.msra.mxu0 0.0
    %138 = vmatprep.subr.mxu0 0.0
    %139 = vmatpush1.msra.mxu0 0.0
    %140 = vmatprep.subr.mxu0 0.0
    %141 = vmatpush1.msra.mxu0 0.0
    %142 = vmatprep.subr.mxu0 0.0
    %143 = vmatpush1.msra.mxu0 0.0
    %144 = vmatprep.subr.mxu0 0.0
    %145 = vmatpush1.msra.mxu0 %v115
    %146 = vmatprep.subr.mxu0 0.0
    %147 = vmatpush1.msra.mxu0 %v114
    %148 = vmatprep.subr.mxu0 0.0
    %149 = vmatpush1.msra.mxu0 %v113
    %150 = vmatprep.subr.mxu0 0.0
    %151 = vmatpush1.msra.mxu0 %v112
    %152 = vmatprep.subr.mxu0 0.0
    %153 = vmatpush2.msra.mxu0 0.0
    %154 = vmatprep.subr.mxu0 0.0
    %155 = vmatpush2.msra.mxu0 0.0
    %156 = vmatprep.subr.mxu0 0.0
    %157 = vmatpush2.msra.mxu0 0.0
    %158 = vmatprep.subr.mxu0 0.0
    %159 = vmatpush2.msra.mxu0 0.0
    %160 = vmatprep.subr.mxu0 0.0
    %161 = vmatpush2.msra.mxu0 0.0
    %162 = vmatprep.subr.mxu0 0.0
    %163 = vmatpush2.msra.mxu0 0.0
    %164 = vmatprep.subr.mxu0 0.0
    %165 = vmatpush2.msra.mxu0 0.0
    %166 = vmatprep.subr.mxu0 0.0
    %167 = vmatpush2.msra.mxu0 0.0
    %168 = vmatprep.subr.mxu0 0.0
    %169 = vmatpush2.msra.mxu0 0.0
    %170 = vmatprep.subr.mxu0 0.0
    %171 = vmatpush2.msra.mxu0 0.0
    %172 = vmatprep.subr.mxu0 0.0
    %173 = vmatpush2.msra.mxu0 0.0
    %174 = vmatprep.subr.mxu0 0.0
    %175 = vmatpush2.msra.mxu0 0.0
    %176 = vmatprep.subr.mxu0 0.0
    %177 = vmatpush2.msra.mxu0 0.0
    %178 = vmatprep.subr.mxu0 0.0
    %179 = vmatpush2.msra.mxu0 0.0
    %180 = vmatprep.subr.mxu0 0.0
    %181 = vmatpush2.msra.mxu0 0.0
    %182 = vmatprep.subr.mxu0 0.0
    %183 = vmatpush2.msra.mxu0 0.0
    %184 = vmatprep.mubr.f32.mxu0 0.0
    %185 = vmatmul.mubr.f32.gmra.mxu0 %v118
    %v186 = vpop.f32.mrf.mxu0
    %v187 = vadd.f32 0.0, %v186
    %v188 = vpop.f32.mrf.mxu0
    %189 = vdwg.mxu0
    %v190 = vld [vmem:[%s6 + $0x30] sm:$0xff]
    %v191 = vld [vmem:[%s6 + $0x38] sm:$0xff]
    %v192 = vld [vmem:[%s6 + $0x40] sm:$0xff]
    %v193 = vld [vmem:[%s6 + $0x48] sm:$0xff]
    %194 = vmatprep.subr.mxu0 0.0
    %195 = vmatpush1.msra.mxu0 0.0
    %196 = vmatprep.subr.mxu0 0.0
    %197 = vmatpush1.msra.mxu0 0.0
    %198 = vmatprep.subr.mxu0 0.0
    %199 = vmatpush1.msra.mxu0 0.0
    %200 = vmatprep.subr.mxu0 0.0
    %201 = vmatpush1.msra.mxu0 0.0
    %202 = vmatprep.subr.mxu0 0.0
    %203 = vmatpush1.msra.mxu0 0.0
    %204 = vmatprep.subr.mxu0 0.0
    %205 = vmatpush1.msra.mxu0 0.0
    %206 = vmatprep.subr.mxu0 0.0
    %207 = vmatpush1.msra.mxu0 0.0
    %208 = vmatprep.subr.mxu0 0.0
    %209 = vmatpush1.msra.mxu0 0.0
    %210 = vmatprep.subr.mxu0 0.0
    %211 = vmatpush1.msra.mxu0 0.0
    %212 = vmatprep.subr.mxu0 0.0
    %213 = vmatpush1.msra.mxu0 0.0
    %214 = vmatprep.subr.mxu0 0.0
    %215 = vmatpush1.msra.mxu0 0.0
    %216 = vmatprep.subr.mxu0 0.0
    %217 = vmatpush1.msra.mxu0 0.0
    %218 = vmatprep.subr.mxu0 0.0
    %219 = vmatpush1.msra.mxu0 %v193
    %220 = vmatprep.subr.mxu0 0.0
    %221 = vmatpush1.msra.mxu0 %v192
    %222 = vmatprep.subr.mxu0 0.0
    %223 = vmatpush1.msra.mxu0 %v191
    %224 = vmatprep.subr.mxu0 0.0
    %225 = vmatpush1.msra.mxu0 %v190
    %226 = vmatprep.subr.mxu0 0.0
    %227 = vmatpush2.msra.mxu0 0.0
    %228 = vmatprep.subr.mxu0 0.0
    %229 = vmatpush2.msra.mxu0 0.0
    %230 = vmatprep.subr.mxu0 0.0
    %231 = vmatpush2.msra.mxu0 0.0
    %232 = vmatprep.subr.mxu0 0.0
    %233 = vmatpush2.msra.mxu0 0.0
    %234 = vmatprep.subr.mxu0 0.0
    %235 = vmatpush2.msra.mxu0 0.0
    %236 = vmatprep.subr.mxu0 0.0
    %237 = vmatpush2.msra.mxu0 0.0
    %238 = vmatprep.subr.mxu0 0.0
    %239 = vmatpush2.msra.mxu0 0.0
    %240 = vmatprep.subr.mxu0 0.0
    %241 = vmatpush2.msra.mxu0 0.0
    %242 = vmatprep.subr.mxu0 0.0
    %243 = vmatpush2.msra.mxu0 0.0
    %244 = vmatprep.subr.mxu0 0.0
    %245 = vmatpush2.msra.mxu0 0.0
    %246 = vmatprep.subr.mxu0 0.0
    %247 = vmatpush2.msra.mxu0 0.0
    %248 = vmatprep.subr.mxu0 0.0
    %249 = vmatpush2.msra.mxu0 0.0
    %250 = vmatprep.subr.mxu0 0.0
    %251 = vmatpush2.msra.mxu0 0.0
    %252 = vmatprep.subr.mxu0 0.0
    %253 = vmatpush2.msra.mxu0 0.0
    %254 = vmatprep.subr.mxu0 0.0
    %255 = vmatpush2.msra.mxu0 0.0
    %256 = vmatprep.subr.mxu0 0.0
    %257 = vmatpush2.msra.mxu0 0.0
    %258 = vmatprep.mubr.f32.mxu0 0.0
    %259 = vmatmul.mubr.f32.gmra.mxu0 %v118
    %v260 = vpop.f32.mrf.mxu0
    %v261 = vadd.f32 0.0, %v260
    %v262 = vpop.f32.mrf.mxu0
    %263 = vdwg.mxu0
    %v264 = vlaneseq
    %v265 = vand.u32 %v264, 127
    %v266 = vld [vmem:[%s2] sm:$0xff]
    %v267 = vld [vmem:[%s2 + $0x8] sm:$0xff]
    %268 = vset.pattern.permute.xlu0 0
    %269 = vperm.xlu0 %268, %v266
    %v270 = vpop.permute.xlu0 %269
    %271 = vset.pattern.permute.xlu0 0
    %272 = vperm.xlu0 %271, %v267
    %v273 = vpop.permute.xlu0 %272
    %vm274 = vcmp.eq.s32.totalorder %v265, %v270
    %vm275 = vcmp.eq.s32.totalorder %v265, %v273
    %v276 = vsel %vm274, 1, 0
    %v277 = vsel %vm275, 1, 0
    %v278 = vcvt.s32.f32 %v276
    %v279 = vcvt.s32.f32 %v277
    %v280 = vld [vmem:[%s3] sm:$0xff]
    %v281 = vld [vmem:[%s3 + $0x8] sm:$0xff]
    %282 = vset.pattern.permute.xlu0 0
    %283 = vperm.xlu0 %282, %v280
    %v284 = vpop.permute.xlu0 %283
    %285 = vset.pattern.permute.xlu0 0
    %286 = vperm.xlu0 %285, %v281
    %v287 = vpop.permute.xlu0 %286
    %vm288 = vcmp.eq.s32.totalorder %v265, %v284
    %vm289 = vcmp.eq.s32.totalorder %v265, %v287
    %v290 = vsel %vm288, 1, 0
    %v291 = vsel %vm289, 1, 0
    %v292 = vcvt.s32.f32 %v290
    %v293 = vcvt.s32.f32 %v291
    %vm294 = vcmask 64512
    %v296 = vsel %vm294, %v292, 0
    %v299 = vsel %vm294, %v293, 0
    %301 = vmatprep.subr.mxu0 0.0
    %302 = vmatpush1.msra.mxu0 0.0
    %303 = vmatprep.subr.mxu0 0.0
    %304 = vmatpush1.msra.mxu0 0.0
    %305 = vmatprep.subr.mxu0 0.0
    %306 = vmatpush1.msra.mxu0 0.0
    %307 = vmatprep.subr.mxu0 0.0
    %308 = vmatpush1.msra.mxu0 0.0
    %309 = vmatprep.subr.mxu0 0.0
    %310 = vmatpush1.msra.mxu0 0.0
    %311 = vmatprep.subr.mxu0 0.0
    %312 = vmatpush1.msra.mxu0 0.0
    %313 = vmatprep.subr.mxu0 0.0
    %314 = vmatpush1.msra.mxu0 0.0
    %315 = vmatprep.subr.mxu0 0.0
    %316 = vmatpush1.msra.mxu0 0.0
    %317 = vmatprep.subr.mxu0 0.0
    %318 = vmatpush1.msra.mxu0 0.0
    %319 = vmatprep.subr.mxu0 0.0
    %320 = vmatpush1.msra.mxu0 0.0
    %321 = vmatprep.subr.mxu0 0.0
    %322 = vmatpush1.msra.mxu0 0.0
    %323 = vmatprep.subr.mxu0 0.0
    %324 = vmatpush1.msra.mxu0 0.0
    %325 = vmatprep.subr.mxu0 0.0
    %326 = vmatpush1.msra.mxu0 0.0
    %327 = vmatprep.subr.mxu0 0.0
    %328 = vmatpush1.msra.mxu0 0.0
    %329 = vmatprep.subr.mxu0 0.0
    %330 = vmatpush1.msra.mxu0 0.0
    %331 = vmatprep.subr.mxu0 0.0
    %332 = vmatpush1.msra.mxu0 %v261
    %333 = vmatprep.subr.mxu0 0.0
    %334 = vmatpush2.msra.mxu0 0.0
    %335 = vmatprep.subr.mxu0 0.0
    %336 = vmatpush2.msra.mxu0 0.0
    %337 = vmatprep.subr.mxu0 0.0
    %338 = vmatpush2.msra.mxu0 0.0
    %339 = vmatprep.subr.mxu0 0.0
    %340 = vmatpush2.msra.mxu0 0.0
    %341 = vmatprep.subr.mxu0 0.0
    %342 = vmatpush2.msra.mxu0 0.0
    %343 = vmatprep.subr.mxu0 0.0
    %344 = vmatpush2.msra.mxu0 0.0
    %345 = vmatprep.subr.mxu0 0.0
    %346 = vmatpush2.msra.mxu0 0.0
    %347 = vmatprep.subr.mxu0 0.0
    %348 = vmatpush2.msra.mxu0 0.0
    %349 = vmatprep.subr.mxu0 0.0
    %350 = vmatpush2.msra.mxu0 0.0
    %351 = vmatprep.subr.mxu0 0.0
    %352 = vmatpush2.msra.mxu0 0.0
    %353 = vmatprep.subr.mxu0 0.0
    %354 = vmatpush2.msra.mxu0 0.0
    %355 = vmatprep.subr.mxu0 0.0
    %356 = vmatpush2.msra.mxu0 0.0
    %357 = vmatprep.subr.mxu0 0.0
    %358 = vmatpush2.msra.mxu0 0.0
    %359 = vmatprep.subr.mxu0 0.0
    %360 = vmatpush2.msra.mxu0 0.0
    %361 = vmatprep.subr.mxu0 0.0
    %362 = vmatpush2.msra.mxu0 0.0
    %363 = vmatprep.subr.mxu0 0.0
    %364 = vmatpush2.msra.mxu0 0.0
    %365 = vmatprep.mubr.f32.mxu0 0.0
    %366 = vmatmul.mubr.f32.gmra.mxu0 %v296
    %v367 = vpop.f32.mrf.mxu0
    %v368 = vadd.f32 0.0, %v367
    %v369 = vpop.f32.mrf.mxu0
    %370 = vmatprep.mubr.f32.mxu0 0.0
    %371 = vmatmul.mubr.f32.gmra.mxu0 %v299
    %v372 = vpop.f32.mrf.mxu0
    %v373 = vadd.f32 0.0, %v372
    %v374 = vpop.f32.mrf.mxu0
    %375 = vdwg.mxu0
    %v377 = vsel %vm294, %v278, 0
    %v380 = vsel %vm294, %v279, 0
    %382 = vmatprep.subr.mxu0 0.0
    %383 = vmatpush1.msra.mxu0 0.0
    %384 = vmatprep.subr.mxu0 0.0
    %385 = vmatpush1.msra.mxu0 0.0
    %386 = vmatprep.subr.mxu0 0.0
    %387 = vmatpush1.msra.mxu0 0.0
    %388 = vmatprep.subr.mxu0 0.0
    %389 = vmatpush1.msra.mxu0 0.0
    %390 = vmatprep.subr.mxu0 0.0
    %391 = vmatpush1.msra.mxu0 0.0
    %392 = vmatprep.subr.mxu0 0.0
    %393 = vmatpush1.msra.mxu0 0.0
    %394 = vmatprep.subr.mxu0 0.0
    %395 = vmatpush1.msra.mxu0 0.0
    %396 = vmatprep.subr.mxu0 0.0
    %397 = vmatpush1.msra.mxu0 0.0
    %398 = vmatprep.subr.mxu0 0.0
    %399 = vmatpush1.msra.mxu0 0.0
    %400 = vmatprep.subr.mxu0 0.0
    %401 = vmatpush1.msra.mxu0 0.0
    %402 = vmatprep.subr.mxu0 0.0
    %403 = vmatpush1.msra.mxu0 0.0
    %404 = vmatprep.subr.mxu0 0.0
    %405 = vmatpush1.msra.mxu0 0.0
    %406 = vmatprep.subr.mxu0 0.0
    %407 = vmatpush1.msra.mxu0 0.0
    %408 = vmatprep.subr.mxu0 0.0
    %409 = vmatpush1.msra.mxu0 0.0
    %410 = vmatprep.subr.mxu0 0.0
    %411 = vmatpush1.msra.mxu0 0.0
    %412 = vmatprep.subr.mxu0 0.0
    %413 = vmatpush1.msra.mxu0 %v187
    %414 = vmatprep.subr.mxu0 0.0
    %415 = vmatpush2.msra.mxu0 0.0
    %416 = vmatprep.subr.mxu0 0.0
    %417 = vmatpush2.msra.mxu0 0.0
    %418 = vmatprep.subr.mxu0 0.0
    %419 = vmatpush2.msra.mxu0 0.0
    %420 = vmatprep.subr.mxu0 0.0
    %421 = vmatpush2.msra.mxu0 0.0
    %422 = vmatprep.subr.mxu0 0.0
    %423 = vmatpush2.msra.mxu0 0.0
    %424 = vmatprep.subr.mxu0 0.0
    %425 = vmatpush2.msra.mxu0 0.0
    %426 = vmatprep.subr.mxu0 0.0
    %427 = vmatpush2.msra.mxu0 0.0
    %428 = vmatprep.subr.mxu0 0.0
    %429 = vmatpush2.msra.mxu0 0.0
    %430 = vmatprep.subr.mxu0 0.0
    %431 = vmatpush2.msra.mxu0 0.0
    %432 = vmatprep.subr.mxu0 0.0
    %433 = vmatpush2.msra.mxu0 0.0
    %434 = vmatprep.subr.mxu0 0.0
    %435 = vmatpush2.msra.mxu0 0.0
    %436 = vmatprep.subr.mxu0 0.0
    %437 = vmatpush2.msra.mxu0 0.0
    %438 = vmatprep.subr.mxu0 0.0
    %439 = vmatpush2.msra.mxu0 0.0
    %440 = vmatprep.subr.mxu0 0.0
    %441 = vmatpush2.msra.mxu0 0.0
    %442 = vmatprep.subr.mxu0 0.0
    %443 = vmatpush2.msra.mxu0 0.0
    %444 = vmatprep.subr.mxu0 0.0
    %445 = vmatpush2.msra.mxu0 0.0
    %446 = vmatprep.mubr.f32.mxu0 0.0
    %447 = vmatmul.mubr.f32.gmra.mxu0 %v377
    %v448 = vpop.f32.mrf.mxu0
    %v449 = vadd.f32 %v368, %v448
    %v450 = vpop.f32.mrf.mxu0
    %451 = vmatprep.mubr.f32.mxu0 0.0
    %452 = vmatmul.mubr.f32.gmra.mxu0 %v380
    %v453 = vpop.f32.mrf.mxu0
    %v454 = vadd.f32 %v373, %v453
    %v455 = vpop.f32.mrf.mxu0
    %456 = vdwg.mxu0
    %v457 = vld [vmem:[%s1] sm:$0xff]
    %v458 = vld [vmem:[%s1 + $0x8] sm:$0xff]
    %v459 = vld [vmem:[%s6 + $0x50] sm:$0xff]
    %v461 = vsel %vm294, %v457, 0
    %v464 = vsel %vm294, %v458, 0
    %466 = vmatprep.subr.mxu0 0.0
    %467 = vmatpush1.msra.mxu0 0.0
    %468 = vmatprep.subr.mxu0 0.0
    %469 = vmatpush1.msra.mxu0 0.0
    %470 = vmatprep.subr.mxu0 0.0
    %471 = vmatpush1.msra.mxu0 0.0
    %472 = vmatprep.subr.mxu0 0.0
    %473 = vmatpush1.msra.mxu0 0.0
    %474 = vmatprep.subr.mxu0 0.0
    %475 = vmatpush1.msra.mxu0 0.0
    %476 = vmatprep.subr.mxu0 0.0
    %477 = vmatpush1.msra.mxu0 0.0
    %478 = vmatprep.subr.mxu0 0.0
    %479 = vmatpush1.msra.mxu0 0.0
    %480 = vmatprep.subr.mxu0 0.0
    %481 = vmatpush1.msra.mxu0 0.0
    %482 = vmatprep.subr.mxu0 0.0
    %483 = vmatpush1.msra.mxu0 0.0
    %484 = vmatprep.subr.mxu0 0.0
    %485 = vmatpush1.msra.mxu0 0.0
    %486 = vmatprep.subr.mxu0 0.0
    %487 = vmatpush1.msra.mxu0 0.0
    %488 = vmatprep.subr.mxu0 0.0
    %489 = vmatpush1.msra.mxu0 0.0
    %490 = vmatprep.subr.mxu0 0.0
    %491 = vmatpush1.msra.mxu0 0.0
    %492 = vmatprep.subr.mxu0 0.0
    %493 = vmatpush1.msra.mxu0 0.0
    %494 = vmatprep.subr.mxu0 0.0
    %495 = vmatpush1.msra.mxu0 0.0
    %496 = vmatprep.subr.mxu0 0.0
    %497 = vmatpush1.msra.mxu0 %v459
    %498 = vmatprep.subr.mxu0 0.0
    %499 = vmatpush2.msra.mxu0 0.0
    %500 = vmatprep.subr.mxu0 0.0
    %501 = vmatpush2.msra.mxu0 0.0
    %502 = vmatprep.subr.mxu0 0.0
    %503 = vmatpush2.msra.mxu0 0.0
    %504 = vmatprep.subr.mxu0 0.0
    %505 = vmatpush2.msra.mxu0 0.0
    %506 = vmatprep.subr.mxu0 0.0
    %507 = vmatpush2.msra.mxu0 0.0
    %508 = vmatprep.subr.mxu0 0.0
    %509 = vmatpush2.msra.mxu0 0.0
    %510 = vmatprep.subr.mxu0 0.0
    %511 = vmatpush2.msra.mxu0 0.0
    %512 = vmatprep.subr.mxu0 0.0
    %513 = vmatpush2.msra.mxu0 0.0
    %514 = vmatprep.subr.mxu0 0.0
    %515 = vmatpush2.msra.mxu0 0.0
    %516 = vmatprep.subr.mxu0 0.0
    %517 = vmatpush2.msra.mxu0 0.0
    %518 = vmatprep.subr.mxu0 0.0
    %519 = vmatpush2.msra.mxu0 0.0
    %520 = vmatprep.subr.mxu0 0.0
    %521 = vmatpush2.msra.mxu0 0.0
    %522 = vmatprep.subr.mxu0 0.0
    %523 = vmatpush2.msra.mxu0 0.0
    %524 = vmatprep.subr.mxu0 0.0
    %525 = vmatpush2.msra.mxu0 0.0
    %526 = vmatprep.subr.mxu0 0.0
    %527 = vmatpush2.msra.mxu0 0.0
    %528 = vmatprep.subr.mxu0 0.0
    %529 = vmatpush2.msra.mxu0 0.0
    %530 = vmatprep.mubr.f32.mxu0 0.0
    %531 = vmatmul.mubr.f32.gmra.mxu0 %v461
    %v532 = vpop.f32.mrf.mxu0
    %v533 = vadd.f32 0.0, %v532
    %v534 = vpop.f32.mrf.mxu0
    %535 = vmatprep.mubr.f32.mxu0 0.0
    %536 = vmatmul.mubr.f32.gmra.mxu0 %v464
    %v537 = vpop.f32.mrf.mxu0
    %v538 = vadd.f32 0.0, %v537
    %v539 = vpop.f32.mrf.mxu0
    %540 = vdwg.mxu0
    %v541 = vadd.f32 %v449, %v533
    %v542 = vadd.f32 %v454, %v538
    %v543 = vld [vmem:[%s7 + $0x1] sm:$0x1]
    %v544 = vlaneseq
    %v545 = vshrl.u32 %v544, 7
    %v546 = vsub.s32 0, %v545
    %v547 = vrot.slane %v543, %v546
    %v548 = vadd.f32 %v541, %v547
    %v549 = vadd.f32 %v542, %v547
    %v550 = vmax.f32 %v548, 0.0
    %v551 = vmax.f32 %v549, 0.0
    %v552 = vld [vmem:[%s6 + $0x58] sm:$0xff]
    %v553 = vld [vmem:[%s6 + $0x60] sm:$0xff]
    %v554 = vld [vmem:[%s6 + $0x68] sm:$0xff]
    %v555 = vld [vmem:[%s6 + $0x70] sm:$0xff]
    %v556 = vld [vmem:[%s7 + $0x2] sm:$0x1]
    %v557 = vlaneseq
    %v558 = vshrl.u32 %v557, 7
    %v559 = vsub.s32 0, %v558
    %v560 = vrot.slane %v556, %v559
    %v562 = vsel %vm116, %v550, 0
    %v565 = vsel %vm116, %v551, 0
    %567 = vmatprep.subr.mxu0 0.0
    %568 = vmatpush1.msra.mxu0 0.0
    %569 = vmatprep.subr.mxu0 0.0
    %570 = vmatpush1.msra.mxu0 0.0
    %571 = vmatprep.subr.mxu0 0.0
    %572 = vmatpush1.msra.mxu0 0.0
    %573 = vmatprep.subr.mxu0 0.0
    %574 = vmatpush1.msra.mxu0 0.0
    %575 = vmatprep.subr.mxu0 0.0
    %576 = vmatpush1.msra.mxu0 0.0
    %577 = vmatprep.subr.mxu0 0.0
    %578 = vmatpush1.msra.mxu0 0.0
    %579 = vmatprep.subr.mxu0 0.0
    %580 = vmatpush1.msra.mxu0 0.0
    %581 = vmatprep.subr.mxu0 0.0
    %582 = vmatpush1.msra.mxu0 0.0
    %583 = vmatprep.subr.mxu0 0.0
    %584 = vmatpush1.msra.mxu0 0.0
    %585 = vmatprep.subr.mxu0 0.0
    %586 = vmatpush1.msra.mxu0 0.0
    %587 = vmatprep.subr.mxu0 0.0
    %588 = vmatpush1.msra.mxu0 0.0
    %589 = vmatprep.subr.mxu0 0.0
    %590 = vmatpush1.msra.mxu0 0.0
    %591 = vmatprep.subr.mxu0 0.0
    %592 = vmatpush1.msra.mxu0 %v555
    %593 = vmatprep.subr.mxu0 0.0
    %594 = vmatpush1.msra.mxu0 %v554
    %595 = vmatprep.subr.mxu0 0.0
    %596 = vmatpush1.msra.mxu0 %v553
    %597 = vmatprep.subr.mxu0 0.0
    %598 = vmatpush1.msra.mxu0 %v552
    %599 = vmatprep.subr.mxu0 0.0
    %600 = vmatpush2.msra.mxu0 0.0
    %601 = vmatprep.subr.mxu0 0.0
    %602 = vmatpush2.msra.mxu0 0.0
    %603 = vmatprep.subr.mxu0 0.0
    %604 = vmatpush2.msra.mxu0 0.0
    %605 = vmatprep.subr.mxu0 0.0
    %606 = vmatpush2.msra.mxu0 0.0
    %607 = vmatprep.subr.mxu0 0.0
    %608 = vmatpush2.msra.mxu0 0.0
    %609 = vmatprep.subr.mxu0 0.0
    %610 = vmatpush2.msra.mxu0 0.0
    %611 = vmatprep.subr.mxu0 0.0
    %612 = vmatpush2.msra.mxu0 0.0
    %613 = vmatprep.subr.mxu0 0.0
    %614 = vmatpush2.msra.mxu0 0.0
    %615 = vmatprep.subr.mxu0 0.0
    %616 = vmatpush2.msra.mxu0 0.0
    %617 = vmatprep.subr.mxu0 0.0
    %618 = vmatpush2.msra.mxu0 0.0
    %619 = vmatprep.subr.mxu0 0.0
    %620 = vmatpush2.msra.mxu0 0.0
    %621 = vmatprep.subr.mxu0 0.0
    %622 = vmatpush2.msra.mxu0 0.0
    %623 = vmatprep.subr.mxu0 0.0
    %624 = vmatpush2.msra.mxu0 0.0
    %625 = vmatprep.subr.mxu0 0.0
    %626 = vmatpush2.msra.mxu0 0.0
    %627 = vmatprep.subr.mxu0 0.0
    %628 = vmatpush2.msra.mxu0 0.0
    %629 = vmatprep.subr.mxu0 0.0
    %630 = vmatpush2.msra.mxu0 0.0
    %631 = vmatprep.mubr.f32.mxu0 0.0
    %632 = vmatmul.mubr.f32.gmra.mxu0 %v562
    %v633 = vpop.f32.mrf.mxu0
    %v634 = vadd.f32 %v560, %v633
    %v635 = vpop.f32.mrf.mxu0
    %636 = vmatprep.mubr.f32.mxu0 0.0
    %637 = vmatmul.mubr.f32.gmra.mxu0 %v565
    %v638 = vpop.f32.mrf.mxu0
    %v639 = vadd.f32 %v560, %v638
    %v640 = vpop.f32.mrf.mxu0
    %641 = vdwg.mxu0
    %v642 = vmax.f32 %v634, 0.0
    %v643 = vmax.f32 %v639, 0.0
    %644 = vxpose.xlu0.b32.start [1/16] %v278, 128
    %645 = vxpose.xlu0.b32.cont [2/16] %v279, 128
    %646 = vxpose.xlu0.b32.cont [3/16] 0.0, 128
    %647 = vxpose.xlu0.b32.cont [4/16] 0.0, 128
    %648 = vxpose.xlu0.b32.cont [5/16] 0.0, 128
    %649 = vxpose.xlu0.b32.cont [6/16] 0.0, 128
    %650 = vxpose.xlu0.b32.cont [7/16] 0.0, 128
    %651 = vxpose.xlu0.b32.cont [8/16] 0.0, 128
    %652 = vxpose.xlu0.b32.cont [9/16] 0.0, 128
    %653 = vxpose.xlu0.b32.cont [10/16] 0.0, 128
    %654 = vxpose.xlu0.b32.cont [11/16] 0.0, 128
    %655 = vxpose.xlu0.b32.cont [12/16] 0.0, 128
    %656 = vxpose.xlu0.b32.cont [13/16] 0.0, 128
    %657 = vxpose.xlu0.b32.cont [14/16] 0.0, 128
    %658 = vxpose.xlu0.b32.cont [15/16] 0.0, 128
    %659 = vxpose.xlu0.b32.end [16/16] 0.0, 128
    %v660 = vpop.trf.xlu0
    %v661 = vpop.trf.xlu0
    %v662 = vpop.trf.xlu0
    %v663 = vpop.trf.xlu0
    %v664 = vpop.trf.xlu0
    %v665 = vpop.trf.xlu0
    %v666 = vpop.trf.xlu0
    %v667 = vpop.trf.xlu0
    %v668 = vpop.trf.xlu0
    %v669 = vpop.trf.xlu0
    %v670 = vpop.trf.xlu0
    %v671 = vpop.trf.xlu0
    %v672 = vpop.trf.xlu0
    %v673 = vpop.trf.xlu0
    %v674 = vpop.trf.xlu0
    %v675 = vpop.trf.xlu0
    %v677 = vsel %vm38, %v660, 0
    %679 = vmatprep.subr.mxu0 0.0
    %680 = vmatpush1.msra.mxu0 0.0
    %681 = vmatprep.subr.mxu0 0.0
    %682 = vmatpush1.msra.mxu0 0.0
    %683 = vmatprep.subr.mxu0 0.0
    %684 = vmatpush1.msra.mxu0 0.0
    %685 = vmatprep.subr.mxu0 0.0
    %686 = vmatpush1.msra.mxu0 0.0
    %687 = vmatprep.subr.mxu0 0.0
    %688 = vmatpush1.msra.mxu0 0.0
    %689 = vmatprep.subr.mxu0 0.0
    %690 = vmatpush1.msra.mxu0 0.0
    %691 = vmatprep.subr.mxu0 0.0
    %692 = vmatpush1.msra.mxu0 0.0
    %693 = vmatprep.subr.mxu0 0.0
    %694 = vmatpush1.msra.mxu0 0.0
    %695 = vmatprep.subr.mxu0 0.0
    %696 = vmatpush1.msra.mxu0 0.0
    %697 = vmatprep.subr.mxu0 0.0
    %698 = vmatpush1.msra.mxu0 0.0
    %699 = vmatprep.subr.mxu0 0.0
    %700 = vmatpush1.msra.mxu0 0.0
    %701 = vmatprep.subr.mxu0 0.0
    %702 = vmatpush1.msra.mxu0 0.0
    %703 = vmatprep.subr.mxu0 0.0
    %704 = vmatpush1.msra.mxu0 0.0
    %705 = vmatprep.subr.mxu0 0.0
    %706 = vmatpush1.msra.mxu0 0.0
    %707 = vmatprep.subr.mxu0 0.0
    %708 = vmatpush1.msra.mxu0 %v643
    %709 = vmatprep.subr.mxu0 0.0
    %710 = vmatpush1.msra.mxu0 %v642
    %711 = vmatprep.subr.mxu0 0.0
    %712 = vmatpush2.msra.mxu0 0.0
    %713 = vmatprep.subr.mxu0 0.0
    %714 = vmatpush2.msra.mxu0 0.0
    %715 = vmatprep.subr.mxu0 0.0
    %716 = vmatpush2.msra.mxu0 0.0
    %717 = vmatprep.subr.mxu0 0.0
    %718 = vmatpush2.msra.mxu0 0.0
    %719 = vmatprep.subr.mxu0 0.0
    %720 = vmatpush2.msra.mxu0 0.0
    %721 = vmatprep.subr.mxu0 0.0
    %722 = vmatpush2.msra.mxu0 0.0
    %723 = vmatprep.subr.mxu0 0.0
    %724 = vmatpush2.msra.mxu0 0.0
    %725 = vmatprep.subr.mxu0 0.0
    %726 = vmatpush2.msra.mxu0 0.0
    %727 = vmatprep.subr.mxu0 0.0
    %728 = vmatpush2.msra.mxu0 0.0
    %729 = vmatprep.subr.mxu0 0.0
    %730 = vmatpush2.msra.mxu0 0.0
    %731 = vmatprep.subr.mxu0 0.0
    %732 = vmatpush2.msra.mxu0 0.0
    %733 = vmatprep.subr.mxu0 0.0
    %734 = vmatpush2.msra.mxu0 0.0
    %735 = vmatprep.subr.mxu0 0.0
    %736 = vmatpush2.msra.mxu0 0.0
    %737 = vmatprep.subr.mxu0 0.0
    %738 = vmatpush2.msra.mxu0 0.0
    %739 = vmatprep.subr.mxu0 0.0
    %740 = vmatpush2.msra.mxu0 0.0
    %741 = vmatprep.subr.mxu0 0.0
    %742 = vmatpush2.msra.mxu0 0.0
    %743 = vmatprep.mubr.f32.mxu0 0.0
    %744 = vmatmul.mubr.f32.gmra.mxu0 %v677
    %v745 = vpop.f32.mrf.mxu0
    %v746 = vadd.f32 0.0, %v745
    %v747 = vpop.f32.mrf.mxu0
    %748 = vdwg.mxu0
    %v749 = vld [vmem:[%s6 + $0x78] sm:$0xff]
    %v750 = vld [vmem:[%s6 + $0x80] sm:$0xff]
    %v751 = vld [vmem:[%s6 + $0x88] sm:$0xff]
    %v752 = vld [vmem:[%s6 + $0x90] sm:$0xff]
    %v753 = vld [vmem:[%s6 + $0x98] sm:$0xff]
    %v754 = vld [vmem:[%s6 + $0xa0] sm:$0xff]
    %v755 = vld [vmem:[%s6 + $0xa8] sm:$0xff]
    %v756 = vld [vmem:[%s6 + $0xb0] sm:$0xff]
    %v758 = vsel %vm116, %v746, 0
    %760 = vmatprep.subr.mxu0 0.0
    %761 = vmatpush1.msra.mxu0 0.0
    %762 = vmatprep.subr.mxu0 0.0
    %763 = vmatpush1.msra.mxu0 0.0
    %764 = vmatprep.subr.mxu0 0.0
    %765 = vmatpush1.msra.mxu0 0.0
    %766 = vmatprep.subr.mxu0 0.0
    %767 = vmatpush1.msra.mxu0 0.0
    %768 = vmatprep.subr.mxu0 0.0
    %769 = vmatpush1.msra.mxu0 0.0
    %770 = vmatprep.subr.mxu0 0.0
    %771 = vmatpush1.msra.mxu0 0.0
    %772 = vmatprep.subr.mxu0 0.0
    %773 = vmatpush1.msra.mxu0 0.0
    %774 = vmatprep.subr.mxu0 0.0
    %775 = vmatpush1.msra.mxu0 0.0
    %776 = vmatprep.subr.mxu0 0.0
    %777 = vmatpush1.msra.mxu0 0.0
    %778 = vmatprep.subr.mxu0 0.0
    %779 = vmatpush1.msra.mxu0 0.0
    %780 = vmatprep.subr.mxu0 0.0
    %781 = vmatpush1.msra.mxu0 0.0
    %782 = vmatprep.subr.mxu0 0.0
    %783 = vmatpush1.msra.mxu0 0.0
    %784 = vmatprep.subr.mxu0 0.0
    %785 = vmatpush1.msra.mxu0 %v756
    %786 = vmatprep.subr.mxu0 0.0
    %787 = vmatpush1.msra.mxu0 %v755
    %788 = vmatprep.subr.mxu0 0.0
    %789 = vmatpush1.msra.mxu0 %v754
    %790 = vmatprep.subr.mxu0 0.0
    %791 = vmatpush1.msra.mxu0 %v753
    %792 = vmatprep.subr.mxu0 0.0
    %793 = vmatpush2.msra.mxu0 0.0
    %794 = vmatprep.subr.mxu0 0.0
    %795 = vmatpush2.msra.mxu0 0.0
    %796 = vmatprep.subr.mxu0 0.0
    %797 = vmatpush2.msra.mxu0 0.0
    %798 = vmatprep.subr.mxu0 0.0
    %799 = vmatpush2.msra.mxu0 0.0
    %800 = vmatprep.subr.mxu0 0.0
    %801 = vmatpush2.msra.mxu0 0.0
    %802 = vmatprep.subr.mxu0 0.0
    %803 = vmatpush2.msra.mxu0 0.0
    %804 = vmatprep.subr.mxu0 0.0
    %805 = vmatpush2.msra.mxu0 0.0
    %806 = vmatprep.subr.mxu0 0.0
    %807 = vmatpush2.msra.mxu0 0.0
    %808 = vmatprep.subr.mxu0 0.0
    %809 = vmatpush2.msra.mxu0 0.0
    %810 = vmatprep.subr.mxu0 0.0
    %811 = vmatpush2.msra.mxu0 0.0
    %812 = vmatprep.subr.mxu0 0.0
    %813 = vmatpush2.msra.mxu0 0.0
    %814 = vmatprep.subr.mxu0 0.0
    %815 = vmatpush2.msra.mxu0 0.0
    %816 = vmatprep.subr.mxu0 0.0
    %817 = vmatpush2.msra.mxu0 0.0
    %818 = vmatprep.subr.mxu0 0.0
    %819 = vmatpush2.msra.mxu0 0.0
    %820 = vmatprep.subr.mxu0 0.0
    %821 = vmatpush2.msra.mxu0 0.0
    %822 = vmatprep.subr.mxu0 0.0
    %823 = vmatpush2.msra.mxu0 0.0
    %824 = vmatprep.mubr.f32.mxu0 0.0
    %825 = vmatmul.mubr.f32.gmra.mxu0 %v758
    %v826 = vpop.f32.mrf.mxu0
    %v827 = vadd.f32 0.0, %v826
    %v828 = vpop.f32.mrf.mxu0
    %829 = vdwg.mxu0
    %830 = vmatprep.subr.mxu0 0.0
    %831 = vmatpush1.msra.mxu0 0.0
    %832 = vmatprep.subr.mxu0 0.0
    %833 = vmatpush1.msra.mxu0 0.0
    %834 = vmatprep.subr.mxu0 0.0
    %835 = vmatpush1.msra.mxu0 0.0
    %836 = vmatprep.subr.mxu0 0.0
    %837 = vmatpush1.msra.mxu0 0.0
    %838 = vmatprep.subr.mxu0 0.0
    %839 = vmatpush1.msra.mxu0 0.0
    %840 = vmatprep.subr.mxu0 0.0
    %841 = vmatpush1.msra.mxu0 0.0
    %842 = vmatprep.subr.mxu0 0.0
    %843 = vmatpush1.msra.mxu0 0.0
    %844 = vmatprep.subr.mxu0 0.0
    %845 = vmatpush1.msra.mxu0 0.0
    %846 = vmatprep.subr.mxu0 0.0
    %847 = vmatpush1.msra.mxu0 0.0
    %848 = vmatprep.subr.mxu0 0.0
    %849 = vmatpush1.msra.mxu0 0.0
    %850 = vmatprep.subr.mxu0 0.0
    %851 = vmatpush1.msra.mxu0 0.0
    %852 = vmatprep.subr.mxu0 0.0
    %853 = vmatpush1.msra.mxu0 0.0
    %854 = vmatprep.subr.mxu0 0.0
    %855 = vmatpush1.msra.mxu0 %v752
    %856 = vmatprep.subr.mxu0 0.0
    %857 = vmatpush1.msra.mxu0 %v751
    %858 = vmatprep.subr.mxu0 0.0
    %859 = vmatpush1.msra.mxu0 %v750
    %860 = vmatprep.subr.mxu0 0.0
    %861 = vmatpush1.msra.mxu0 %v749
    %862 = vmatprep.subr.mxu0 0.0
    %863 = vmatpush2.msra.mxu0 0.0
    %864 = vmatprep.subr.mxu0 0.0
    %865 = vmatpush2.msra.mxu0 0.0
    %866 = vmatprep.subr.mxu0 0.0
    %867 = vmatpush2.msra.mxu0 0.0
    %868 = vmatprep.subr.mxu0 0.0
    %869 = vmatpush2.msra.mxu0 0.0
    %870 = vmatprep.subr.mxu0 0.0
    %871 = vmatpush2.msra.mxu0 0.0
    %872 = vmatprep.subr.mxu0 0.0
    %873 = vmatpush2.msra.mxu0 0.0
    %874 = vmatprep.subr.mxu0 0.0
    %875 = vmatpush2.msra.mxu0 0.0
    %876 = vmatprep.subr.mxu0 0.0
    %877 = vmatpush2.msra.mxu0 0.0
    %878 = vmatprep.subr.mxu0 0.0
    %879 = vmatpush2.msra.mxu0 0.0
    %880 = vmatprep.subr.mxu0 0.0
    %881 = vmatpush2.msra.mxu0 0.0
    %882 = vmatprep.subr.mxu0 0.0
    %883 = vmatpush2.msra.mxu0 0.0
    %884 = vmatprep.subr.mxu0 0.0
    %885 = vmatpush2.msra.mxu0 0.0
    %886 = vmatprep.subr.mxu0 0.0
    %887 = vmatpush2.msra.mxu0 0.0
    %888 = vmatprep.subr.mxu0 0.0
    %889 = vmatpush2.msra.mxu0 0.0
    %890 = vmatprep.subr.mxu0 0.0
    %891 = vmatpush2.msra.mxu0 0.0
    %892 = vmatprep.subr.mxu0 0.0
    %893 = vmatpush2.msra.mxu0 0.0
    %894 = vmatprep.mubr.f32.mxu0 0.0
    %895 = vmatmul.mubr.f32.gmra.mxu0 %v118
    %v896 = vpop.f32.mrf.mxu0
    %v897 = vadd.f32 %v827, %v896
    %v898 = vpop.f32.mrf.mxu0
    %899 = vdwg.mxu0
    %v900 = vld [vmem:[%s7 + $0x3] sm:$0x1]
    %v901 = vlaneseq
    %v902 = vshrl.u32 %v901, 7
    %v903 = vsub.s32 0, %v902
    %v904 = vrot.slane %v900, %v903
    %v905 = vadd.f32 %v897, %v904
    %v906 = vmax.f32 %v905, 0.0
    %v907 = vld [vmem:[%s6 + $0xb8] sm:$0xff]
    %v908 = vld [vmem:[%s6 + $0xc0] sm:$0xff]
    %v909 = vld [vmem:[%s6 + $0xc8] sm:$0xff]
    %v910 = vld [vmem:[%s6 + $0xd0] sm:$0xff]
    %v911 = vld [vmem:[%s7 + $0x4] sm:$0x1]
    %v912 = vlaneseq
    %v913 = vshrl.u32 %v912, 7
    %v914 = vsub.s32 0, %v913
    %v915 = vrot.slane %v911, %v914
    %v917 = vsel %vm116, %v906, 0
    %919 = vmatprep.subr.mxu0 0.0
    %920 = vmatpush1.msra.mxu0 0.0
    %921 = vmatprep.subr.mxu0 0.0
    %922 = vmatpush1.msra.mxu0 0.0
    %923 = vmatprep.subr.mxu0 0.0
    %924 = vmatpush1.msra.mxu0 0.0
    %925 = vmatprep.subr.mxu0 0.0
    %926 = vmatpush1.msra.mxu0 0.0
    %927 = vmatprep.subr.mxu0 0.0
    %928 = vmatpush1.msra.mxu0 0.0
    %929 = vmatprep.subr.mxu0 0.0
    %930 = vmatpush1.msra.mxu0 0.0
    %931 = vmatprep.subr.mxu0 0.0
    %932 = vmatpush1.msra.mxu0 0.0
    %933 = vmatprep.subr.mxu0 0.0
    %934 = vmatpush1.msra.mxu0 0.0
    %935 = vmatprep.subr.mxu0 0.0
    %936 = vmatpush1.msra.mxu0 0.0
    %937 = vmatprep.subr.mxu0 0.0
    %938 = vmatpush1.msra.mxu0 0.0
    %939 = vmatprep.subr.mxu0 0.0
    %940 = vmatpush1.msra.mxu0 0.0
    %941 = vmatprep.subr.mxu0 0.0
    %942 = vmatpush1.msra.mxu0 0.0
    %943 = vmatprep.subr.mxu0 0.0
    %944 = vmatpush1.msra.mxu0 %v910
    %945 = vmatprep.subr.mxu0 0.0
    %946 = vmatpush1.msra.mxu0 %v909
    %947 = vmatprep.subr.mxu0 0.0
    %948 = vmatpush1.msra.mxu0 %v908
    %949 = vmatprep.subr.mxu0 0.0
    %950 = vmatpush1.msra.mxu0 %v907
    %951 = vmatprep.subr.mxu0 0.0
    %952 = vmatpush2.msra.mxu0 0.0
    %953 = vmatprep.subr.mxu0 0.0
    %954 = vmatpush2.msra.mxu0 0.0
    %955 = vmatprep.subr.mxu0 0.0
    %956 = vmatpush2.msra.mxu0 0.0
    %957 = vmatprep.subr.mxu0 0.0
    %958 = vmatpush2.msra.mxu0 0.0
    %959 = vmatprep.subr.mxu0 0.0
    %960 = vmatpush2.msra.mxu0 0.0
    %961 = vmatprep.subr.mxu0 0.0
    %962 = vmatpush2.msra.mxu0 0.0
    %963 = vmatprep.subr.mxu0 0.0
    %964 = vmatpush2.msra.mxu0 0.0
    %965 = vmatprep.subr.mxu0 0.0
    %966 = vmatpush2.msra.mxu0 0.0
    %967 = vmatprep.subr.mxu0 0.0
    %968 = vmatpush2.msra.mxu0 0.0
    %969 = vmatprep.subr.mxu0 0.0
    %970 = vmatpush2.msra.mxu0 0.0
    %971 = vmatprep.subr.mxu0 0.0
    %972 = vmatpush2.msra.mxu0 0.0
    %973 = vmatprep.subr.mxu0 0.0
    %974 = vmatpush2.msra.mxu0 0.0
    %975 = vmatprep.subr.mxu0 0.0
    %976 = vmatpush2.msra.mxu0 0.0
    %977 = vmatprep.subr.mxu0 0.0
    %978 = vmatpush2.msra.mxu0 0.0
    %979 = vmatprep.subr.mxu0 0.0
    %980 = vmatpush2.msra.mxu0 0.0
    %981 = vmatprep.subr.mxu0 0.0
    %982 = vmatpush2.msra.mxu0 0.0
    %983 = vmatprep.mubr.f32.mxu0 0.0
    %984 = vmatmul.mubr.f32.gmra.mxu0 %v917
    %v985 = vpop.f32.mrf.mxu0
    %v986 = vadd.f32 %v915, %v985
    %v987 = vpop.f32.mrf.mxu0
    %988 = vdwg.mxu0
    %v989 = vmax.f32 %v986, 0.0
    %v990 = vadd.f32 %v109, %v989
    %v991 = vld [vmem:[%s7 + $0x5] sm:$0x1]
    %v992 = vlaneseq
    %v993 = vshrl.u32 %v992, 7
    %v994 = vsub.s32 0, %v993
    %v995 = vrot.slane %v991, %v994
    %v996 = vmul.f32 %v990, %v995
    %v997 = vsel %vm116, %v996, 0.0
    %998 = vadd.xlane.f32.xlu0 %v997
    %v999 = vpop.xlane.xlu0 %998
    %v1000 = vld [vmem:[%s5] sm:$0xff]
    %v1001 = vmul.f32 %v999, %v1000
    %v1002 = vld [vmem:[%s4] sm:$0xff]
    %1003 = vset.pattern.permute.xlu0 0
    %1004 = vperm.xlu0 %1003, %v1002
    %v1005 = vpop.permute.xlu0 %1004
    %vm1006 = vcmp.eq.s32.totalorder %v265, %v1005
    %v1007 = vsel %vm1006, 1, 0
    %v1008 = vcvt.s32.f32 %v1007
    %1010 = vset.pattern.permute.xlu0 0
    %1011 = vperm.xlu0 %1010, %v1001
    %v1012 = vpop.permute.xlu0 %1011
    %v1014 = vmul.f32 %v1012, %v1008
    %vm1015 = vcmask 15360
    %v1016 = vsel %vm1015, %v1014, 0.0
    %v1017 = vrot.slane %v1016, 4
    %v1018 = vadd.f32 %v1016, %v1017
    %v1019 = vrot.slane %v1018, 2
    %v1020 = vadd.f32 %v1018, %v1019
    %v1021 = vrot.slane %v1020, 1
    %v1022 = vadd.f32 %v1020, %v1021
    %v1023 = vld [vmem:[%s7 + $0x6] sm:$0x1]
    %1025 = vset.pattern.permute.xlu0 0
    %1026 = vperm.xlu0 %1025, %v1023
    %v1027 = vpop.permute.xlu0 %1026
    %v1029 = vadd.f32 %v1022, %v1027
    %vm1030 = vcmask 8192
    %1031 = vst.msk [vmem:[#allocation2] sm:$0x1] %vm1030, %v1029
    // Predicated region
    $region34: #{tpu_custom_call.1} parent=1 // pred_check
      _
    $region35: #{tpu_custom_call.1} parent=1 // pred_check_branch
      %1033 = sbr.rel (0) target = $region37
    $region36: #{tpu_custom_call.1} parent=1 // pred_region
      %s1035 = ssub.s32 16, 16
      %1036 = vsyncadd [#allocation3], %s1035
      %s1038 = sshll.u32 [#allocation2], 4
      %s1039 = int_to_ptr.vmem [resolvable:$true] %s1038
      %1041 = dma.vmem_to_hbm [thread:$0]  %s1039, 16, %s8, [#allocation3]
    $region37: #{tpu_custom_call.1} parent=1 // pred_fallthru
      _
    // Predicated region
    $region38: #{tpu_custom_call.1} parent=1 // pred_check
      _
    $region39: #{tpu_custom_call.1} parent=1 // pred_check_branch
      %1043 = sbr.rel (0) target = $region41
    $region40: #{tpu_custom_call.1} parent=1 // pred_region
      %1044 = dma.done [#allocation3], 16
    $region41: #{tpu_custom_call.1} parent=1 // pred_fallthru
      _
    %1045 = vsyncpa [#allocation3], 1

</llo_original>
